<compile_context>
chip_gen: v5e
topology: v5e:2x2
jax: 0.10.0
libtpu: 0.0.40
codegen_flags: <defaults>
</compile_context>

<pallas_src>
import functools

import jax
import jax.numpy as jnp
from jax import lax
from jax.experimental import pallas as pl
from jax.experimental.pallas import tpu as pltpu


_VMEM_LIMIT_BYTES = 48 * 1024 * 1024   # explicit scoped-VMEM cap: fits v5e/v6e/v7x
_TILE_VMEM_BUDGET = 24 * 1024 * 1024   # budget used to pick the tile (2x headroom)
_MAX_TILE_ROWS = 2048                  # 2048 x 128 lanes per grid step max


def _round_up(x, m):
    return (x + m - 1) // m * m


def _pick_tile_rows(hw_rows, c, x_itemsize, t_itemsize,
                    budget=_TILE_VMEM_BUDGET, max_rows=_MAX_TILE_ROWS):
    """Rows of 128 lanes per grid step, VMEM-budgeted.

    Per sublane-row (128 lanes) of one tile we account for:
      * double-buffered logits + targets input DMAs
      * ~12 full-width f32 intermediates the kernel materializes
        (m, sum_exp, x_t, widened targets, per-class temps, pt/focal/loss/mask).
    """
    per_row = 2 * (c * x_itemsize + t_itemsize) * 128 + 12 * 128 * 4
    rows = budget // per_row
    rows = min(rows, max_rows, hw_rows)
    if rows >= hw_rows:
        return hw_rows                      # one block spans the full extent
    rows = (rows // 32) * 32                # 32-row align (int8 target packing)
    return rows if rows >= 32 else min(32, hw_rows)


def _focal_loss_kernel(x_ref, t_ref, out_ref, *, gamma, alpha, hw_valid,
                       tile_s, need_mask):
    # x_ref block: (1, C, S, 128) logits; t_ref: (1, 1, S, 128) int targets.
    _, C, S, L = x_ref.shape
    t = t_ref[0, 0].astype(jnp.int32)                        # (S, 128)

    # Pass 1 over classes: running max (plain VPU, no cross-sublane reduce).
    m = x_ref[0, 0].astype(jnp.float32)                      # (S, 128)
    for c in range(1, C):
        m = jnp.maximum(m, x_ref[0, c].astype(jnp.float32))

    # Pass 2: sum of exp(x - m) and gather the logit at the target class via
    # per-class scalar compare + select (no (C, T) one-hot / iota temps, and
    # logp = z - lse is never materialized over the class axis).
    sum_exp = None
    x_t = None
    for c in range(C):
        xc = x_ref[0, c].astype(jnp.float32)
        e = jnp.exp(xc - m)
        sum_exp = e if sum_exp is None else sum_exp + e
        x_t = jnp.where(t == c, xc, 0.0 if x_t is None else x_t)

    logpt = (x_t - m) - jnp.log(sum_exp)                     # (S, 128)
    pt = jnp.exp(logpt)                                      # unweighted pt

    if alpha is not None:
        # alpha is a tuple of compile-time Python floats (constructor const).
        at = jnp.zeros_like(pt)
        for c in range(C):
            at = jnp.where(t == c, alpha[c], at)
        logpt = logpt * at

    one_m_pt = 1.0 - pt
    g = float(gamma)
    if g == 0.0:
        focal = jnp.ones_like(pt)
    elif g.is_integer() and 0.0 < g <= 8.0:
        # Integer gamma: a couple of VPU multiplies instead of exp/log pow.
        focal = one_m_pt
        for _ in range(int(g) - 1):
            focal = focal * one_m_pt
    else:
        # Clamp so pow(negative_eps, fractional) cannot produce NaN.
        focal = jnp.maximum(one_m_pt, 0.0) ** g

    loss = -1.0 * focal * logpt                              # (S, 128)

    if need_mask:
        # Mask ragged tail (partial last block and/or 128-alignment pad).
        # Applied via where AFTER all arithmetic, BEFORE the sum, so garbage
        # lanes (incl. NaN/Inf) never reach the output.
        row = pl.program_id(1) * tile_s + lax.broadcasted_iota(
            jnp.int32, (S, L), 0)
        col = lax.broadcasted_iota(jnp.int32, (S, L), 1)
        loss = jnp.where(row * L + col < hw_valid, loss, 0.0)

    # Single sublane-reduce epilogue -> lane-dense (1, 128) partial per step.
    out_ref[...] = jnp.sum(loss, axis=0, keepdims=True).reshape(out_ref.shape)


def focal_loss(x_nchw, target, alpha=None, gamma=0.0, size_average=True):
    """Pallas implementation of FocalLoss.forward.

    x_nchw: (B, C, H, W) logits (f32 or bf16)
    target: (B, H, W) int class indices in [0, C)
    alpha:  None | scalar | list of length C (static Python values)
    """
    B, C, H, W = x_nchw.shape
    HW = H * W

    # alpha handling mirrors the PyTorch constructor (scalar -> [a, 1-a],
    # which implicitly assumes C == 2, like the reference).
    if isinstance(alpha, (float, int)) and not isinstance(alpha, bool):
        alpha = [float(alpha), 1.0 - float(alpha)]
    if alpha is not None:
        alpha = tuple(float(a) for a in alpha)
        if len(alpha) != C:
            raise ValueError(f"alpha must have {C} entries, got {len(alpha)}")

    # Native NCHW layout, spatial split into (rows of 128 lanes).  The reshape
    # is a free contiguous view; only pad to the next multiple of 128 lanes
    # when needed (NOT to a multiple of the tile — ragged blocks are masked).
    x3 = x_nchw.reshape(B, C, HW)
    t_dtype = jnp.int8 if C <= 127 else jnp.int32
    t3 = target.reshape(B, 1, HW).astype(t_dtype)

    HW128 = _round_up(HW, 128)
    if HW128 != HW:
        x3 = jnp.pad(x3, ((0, 0), (0, 0), (0, HW128 - HW)))
        t3 = jnp.pad(t3, ((0, 0), (0, 0), (0, HW128 - HW)))
    hw_rows = HW128 // 128
    x4 = x3.reshape(B, C, hw_rows, 128)
    t4 = t3.reshape(B, 1, hw_rows, 128)

    tile_s = _pick_tile_rows(hw_rows, C, x4.dtype.itemsize, t4.dtype.itemsize)
    num_tiles = pl.cdiv(hw_rows, tile_s)
    need_mask = num_tiles * tile_s * 128 != HW

    kernel = functools.partial(
        _focal_loss_kernel, gamma=float(gamma), alpha=alpha, hw_valid=HW,
        tile_s=tile_s, need_mask=need_mask)

    cost = pl.CostEstimate(
        flops=int(B * HW * (6 * C + 14)),
        transcendentals=int(B * HW * (C + 3)),
        bytes_accessed=int(x4.size * x4.dtype.itemsize
                           + t4.size * t4.dtype.itemsize
                           + B * num_tiles * 128 * 4),
    )

    partials = pl.pallas_call(
        kernel,
        out_shape=jax.ShapeDtypeStruct((B, num_tiles, 1, 128), jnp.float32),
        grid_spec=pltpu.PrefetchScalarGridSpec(
            num_scalar_prefetch=0,
            grid=(B, num_tiles),
            in_specs=[
                pl.BlockSpec((1, C, tile_s, 128), lambda b, s: (b, 0, s, 0)),
                pl.BlockSpec((1, 1, tile_s, 128), lambda b, s: (b, 0, s, 0)),
            ],
            out_specs=pl.BlockSpec((1, 1, 1, 128), lambda b, s: (b, s, 0, 0)),
        ),
        compiler_params=pltpu.CompilerParams(
            dimension_semantics=("parallel", "parallel"),
            vmem_limit_bytes=_VMEM_LIMIT_BYTES,
        ),
        cost_estimate=cost,
    )(x4, t4)

    total = jnp.sum(partials)
    if size_average:
        return total / jnp.float32(B * HW)
    return total


def _reference_focal_loss(x_nchw, target_nchw, alpha, gamma, size_average):
    B, C, H, W = x_nchw.shape
    x2d = jnp.transpose(x_nchw, (0, 2, 3, 1)).reshape(-1, C).astype(jnp.float32)
    t = target_nchw.reshape(-1).astype(jnp.int32)
    logp = jax.nn.log_softmax(x2d, axis=1)
    logpt = jnp.take_along_axis(logp, t[:, None], axis=1)[:, 0]
    pt = jnp.exp(logpt)
    if alpha is not None:
        if isinstance(alpha, (float, int)) and not isinstance(alpha, bool):
            alpha = [float(alpha), 1.0 - float(alpha)]
        at = jnp.asarray(alpha, jnp.float32)[t]
        logpt = logpt * at
    loss = -1.0 * (1.0 - pt) ** gamma * logpt
    return loss.mean() if size_average else loss.sum()


if __name__ == "__main__":
    key = jax.random.PRNGKey(0)
    kx, kt, kx2, kt2 = jax.random.split(key, 4)

    # Case 1/2: aligned spatial extent, integer gamma, per-class alpha.
    B, C, H, W = 2, 4, 16, 16
    x = jax.random.normal(kx, (B, C, H, W), dtype=jnp.float32)
    target = jax.random.randint(kt, (B, H, W), 0, C, dtype=jnp.int32)
    gamma = 2.0
    alpha = [0.1, 0.2, 0.3, 0.4]

    out = focal_loss(x, target, alpha=alpha, gamma=gamma, size_average=True)
    out = jax.block_until_ready(out)
    ref = _reference_focal_loss(x, target, alpha, gamma, True)
    assert jnp.allclose(out, ref, rtol=2e-5, atol=1e-6), (out, ref)

    out_sum = focal_loss(x, target, alpha=alpha, gamma=gamma, size_average=False)
    out_sum = jax.block_until_ready(out_sum)
    ref_sum = _reference_focal_loss(x, target, alpha, gamma, False)
    assert jnp.allclose(out_sum, ref_sum, rtol=2e-5, atol=1e-5), (out_sum, ref_sum)

    # Case 3: non-128-aligned spatial extent (exercises the mask path),
    # fractional gamma (pow path), no alpha.
    B2, C2, H2, W2 = 2, 4, 12, 12
    x2 = jax.random.normal(kx2, (B2, C2, H2, W2), dtype=jnp.float32)
    target2 = jax.random.randint(kt2, (B2, H2, W2), 0, C2, dtype=jnp.int32)
    out2 = focal_loss(x2, target2, alpha=None, gamma=2.5, size_average=True)
    out2 = jax.block_until_ready(out2)
    ref2 = _reference_focal_loss(x2, target2, None, 2.5, True)
    assert jnp.allclose(out2, ref2, rtol=1e-4, atol=1e-6), (out2, ref2)

    print("KERNEL_OK")
</pallas_src>

<mosaic_0001>
module attributes {stable_mosaic.version = 11 : i64} {
  func.func @_focal_loss_kernel(%arg0: i32, %arg1: i32, %arg2: memref<1x4x2x128xf32, #tpu.memory_space<vmem>>, %arg3: memref<1x1x2x128xi8, #tpu.memory_space<vmem>>, %arg4: memref<1x1x1x128xf32, #tpu.memory_space<vmem>>) attributes {dimension_semantics = [#tpu.dimension_semantics<parallel>, #tpu.dimension_semantics<parallel>], iteration_bounds = array<i64: 2, 1>, scalar_prefetch = 0 : i64, scratch_operands = 0 : i64, tpu.core_type = #tpu.core_type<tc>, window_params = [{transform_indices = @transform_0, window_bounds = array<i64: 1, 4, 2, 128>}, {transform_indices = @transform_1, window_bounds = array<i64: 1, 1, 2, 128>}, {transform_indices = @transform_2, window_bounds = array<i64: 1, 1, 1, 128>}]} {
    %c0 = arith.constant 0 : index
    %c0_0 = arith.constant 0 : index
    %c0_1 = arith.constant 0 : index
    %c0_2 = arith.constant 0 : index
    %0 = vector.load %arg3[%c0, %c0_0, %c0_1, %c0_2] : memref<1x1x2x128xi8, #tpu.memory_space<vmem>>, vector<1x1x2x128xi8>
    %1 = vector.shape_cast %0 : vector<1x1x2x128xi8> to vector<2x128xi8>
    %2 = arith.extsi %1 : vector<2x128xi8> to vector<2x128xi32>
    %c0_3 = arith.constant 0 : index
    %c0_4 = arith.constant 0 : index
    %c0_5 = arith.constant 0 : index
    %c0_6 = arith.constant 0 : index
    %3 = vector.load %arg2[%c0_3, %c0_4, %c0_5, %c0_6] : memref<1x4x2x128xf32, #tpu.memory_space<vmem>>, vector<1x1x2x128xf32>
    %4 = vector.shape_cast %3 : vector<1x1x2x128xf32> to vector<2x128xf32>
    %c0_7 = arith.constant 0 : index
    %c1 = arith.constant 1 : index
    %c0_8 = arith.constant 0 : index
    %c0_9 = arith.constant 0 : index
    %5 = vector.load %arg2[%c0_7, %c1, %c0_8, %c0_9] : memref<1x4x2x128xf32, #tpu.memory_space<vmem>>, vector<1x1x2x128xf32>
    %6 = vector.shape_cast %5 : vector<1x1x2x128xf32> to vector<2x128xf32>
    %7 = arith.maximumf %4, %6 : vector<2x128xf32>
    %c0_10 = arith.constant 0 : index
    %c2 = arith.constant 2 : index
    %c0_11 = arith.constant 0 : index
    %c0_12 = arith.constant 0 : index
    %8 = vector.load %arg2[%c0_10, %c2, %c0_11, %c0_12] : memref<1x4x2x128xf32, #tpu.memory_space<vmem>>, vector<1x1x2x128xf32>
    %9 = vector.shape_cast %8 : vector<1x1x2x128xf32> to vector<2x128xf32>
    %10 = arith.maximumf %7, %9 : vector<2x128xf32>
    %c0_13 = arith.constant 0 : index
    %c3 = arith.constant 3 : index
    %c0_14 = arith.constant 0 : index
    %c0_15 = arith.constant 0 : index
    %11 = vector.load %arg2[%c0_13, %c3, %c0_14, %c0_15] : memref<1x4x2x128xf32, #tpu.memory_space<vmem>>, vector<1x1x2x128xf32>
    %12 = vector.shape_cast %11 : vector<1x1x2x128xf32> to vector<2x128xf32>
    %13 = arith.maximumf %10, %12 : vector<2x128xf32>
    %c0_16 = arith.constant 0 : index
    %c0_17 = arith.constant 0 : index
    %c0_18 = arith.constant 0 : index
    %c0_19 = arith.constant 0 : index
    %14 = vector.load %arg2[%c0_16, %c0_17, %c0_18, %c0_19] : memref<1x4x2x128xf32, #tpu.memory_space<vmem>>, vector<1x1x2x128xf32>
    %15 = vector.shape_cast %14 : vector<1x1x2x128xf32> to vector<2x128xf32>
    %16 = arith.subf %15, %13 : vector<2x128xf32>
    %17 = math.exp %16 : vector<2x128xf32>
    %c0_i32 = arith.constant 0 : i32
    %18 = vector.broadcast %c0_i32 : i32 to vector<2x128xi32>
    %19 = arith.cmpi eq, %2, %18 : vector<2x128xi32>
    %cst = arith.constant 0.000000e+00 : f32
    %20 = vector.broadcast %cst : f32 to vector<2x128xf32>
    %21 = arith.select %19, %15, %20 : vector<2x128xi1>, vector<2x128xf32>
    %c0_20 = arith.constant 0 : index
    %c1_21 = arith.constant 1 : index
    %c0_22 = arith.constant 0 : index
    %c0_23 = arith.constant 0 : index
    %22 = vector.load %arg2[%c0_20, %c1_21, %c0_22, %c0_23] : memref<1x4x2x128xf32, #tpu.memory_space<vmem>>, vector<1x1x2x128xf32>
    %23 = vector.shape_cast %22 : vector<1x1x2x128xf32> to vector<2x128xf32>
    %24 = arith.subf %23, %13 : vector<2x128xf32>
    %25 = math.exp %24 : vector<2x128xf32>
    %26 = arith.addf %17, %25 : vector<2x128xf32>
    %c1_i32 = arith.constant 1 : i32
    %27 = vector.broadcast %c1_i32 : i32 to vector<2x128xi32>
    %28 = arith.cmpi eq, %2, %27 : vector<2x128xi32>
    %29 = arith.select %28, %23, %21 : vector<2x128xi1>, vector<2x128xf32>
    %c0_24 = arith.constant 0 : index
    %c2_25 = arith.constant 2 : index
    %c0_26 = arith.constant 0 : index
    %c0_27 = arith.constant 0 : index
    %30 = vector.load %arg2[%c0_24, %c2_25, %c0_26, %c0_27] : memref<1x4x2x128xf32, #tpu.memory_space<vmem>>, vector<1x1x2x128xf32>
    %31 = vector.shape_cast %30 : vector<1x1x2x128xf32> to vector<2x128xf32>
    %32 = arith.subf %31, %13 : vector<2x128xf32>
    %33 = math.exp %32 : vector<2x128xf32>
    %34 = arith.addf %26, %33 : vector<2x128xf32>
    %c2_i32 = arith.constant 2 : i32
    %35 = vector.broadcast %c2_i32 : i32 to vector<2x128xi32>
    %36 = arith.cmpi eq, %2, %35 : vector<2x128xi32>
    %37 = arith.select %36, %31, %29 : vector<2x128xi1>, vector<2x128xf32>
    %c0_28 = arith.constant 0 : index
    %c3_29 = arith.constant 3 : index
    %c0_30 = arith.constant 0 : index
    %c0_31 = arith.constant 0 : index
    %38 = vector.load %arg2[%c0_28, %c3_29, %c0_30, %c0_31] : memref<1x4x2x128xf32, #tpu.memory_space<vmem>>, vector<1x1x2x128xf32>
    %39 = vector.shape_cast %38 : vector<1x1x2x128xf32> to vector<2x128xf32>
    %40 = arith.subf %39, %13 : vector<2x128xf32>
    %41 = math.exp %40 : vector<2x128xf32>
    %42 = arith.addf %34, %41 : vector<2x128xf32>
    %c3_i32 = arith.constant 3 : i32
    %43 = vector.broadcast %c3_i32 : i32 to vector<2x128xi32>
    %44 = arith.cmpi eq, %2, %43 : vector<2x128xi32>
    %45 = arith.select %44, %39, %37 : vector<2x128xi1>, vector<2x128xf32>
    %46 = arith.subf %45, %13 : vector<2x128xf32>
    %47 = math.log %42 : vector<2x128xf32>
    %48 = arith.subf %46, %47 : vector<2x128xf32>
    %49 = math.exp %48 : vector<2x128xf32>
    %cst_32 = arith.constant 0.000000e+00 : f32
    %50 = vector.broadcast %cst_32 : f32 to vector<2x128xf32>
    %c0_i32_33 = arith.constant 0 : i32
    %51 = vector.broadcast %c0_i32_33 : i32 to vector<2x128xi32>
    %52 = arith.cmpi eq, %2, %51 : vector<2x128xi32>
    %cst_34 = arith.constant 1.000000e-01 : f32
    %53 = vector.broadcast %cst_34 : f32 to vector<2x128xf32>
    %54 = arith.select %52, %53, %50 : vector<2x128xi1>, vector<2x128xf32>
    %c1_i32_35 = arith.constant 1 : i32
    %55 = vector.broadcast %c1_i32_35 : i32 to vector<2x128xi32>
    %56 = arith.cmpi eq, %2, %55 : vector<2x128xi32>
    %cst_36 = arith.constant 2.000000e-01 : f32
    %57 = vector.broadcast %cst_36 : f32 to vector<2x128xf32>
    %58 = arith.select %56, %57, %54 : vector<2x128xi1>, vector<2x128xf32>
    %c2_i32_37 = arith.constant 2 : i32
    %59 = vector.broadcast %c2_i32_37 : i32 to vector<2x128xi32>
    %60 = arith.cmpi eq, %2, %59 : vector<2x128xi32>
    %cst_38 = arith.constant 3.000000e-01 : f32
    %61 = vector.broadcast %cst_38 : f32 to vector<2x128xf32>
    %62 = arith.select %60, %61, %58 : vector<2x128xi1>, vector<2x128xf32>
    %c3_i32_39 = arith.constant 3 : i32
    %63 = vector.broadcast %c3_i32_39 : i32 to vector<2x128xi32>
    %64 = arith.cmpi eq, %2, %63 : vector<2x128xi32>
    %cst_40 = arith.constant 4.000000e-01 : f32
    %65 = vector.broadcast %cst_40 : f32 to vector<2x128xf32>
    %66 = arith.select %64, %65, %62 : vector<2x128xi1>, vector<2x128xf32>
    %67 = arith.mulf %48, %66 : vector<2x128xf32>
    %cst_41 = arith.constant 1.000000e+00 : f32
    %68 = vector.broadcast %cst_41 : f32 to vector<2x128xf32>
    %69 = arith.subf %68, %49 : vector<2x128xf32>
    %70 = arith.mulf %69, %69 : vector<2x128xf32>
    %cst_42 = arith.constant -1.000000e+00 : f32
    %71 = vector.broadcast %cst_42 : f32 to vector<2x128xf32>
    %72 = arith.mulf %71, %70 : vector<2x128xf32>
    %73 = arith.mulf %72, %67 : vector<2x128xf32>
    %cst_43 = arith.constant dense<0.000000e+00> : vector<128xf32>
    %74 = vector.multi_reduction <add>, %73, %cst_43 [0] : vector<2x128xf32> to vector<128xf32>
    %75 = vector.shape_cast %74 : vector<128xf32> to vector<1x128xf32>
    %76 = vector.shape_cast %75 : vector<1x128xf32> to vector<1x1x1x128xf32>
    %c0_44 = arith.constant 0 : index
    %c0_45 = arith.constant 0 : index
    %c0_46 = arith.constant 0 : index
    %c0_47 = arith.constant 0 : index
    %77 = vector.load %arg4[%c0_44, %c0_45, %c0_46, %c0_47] : memref<1x1x1x128xf32, #tpu.memory_space<vmem>>, vector<1x1x1x128xf32>
    tpu.vector_store %arg4[%c0_44, %c0_45, %c0_46, %c0_47], %76 {strides = array<i32>} : memref<1x1x1x128xf32, #tpu.memory_space<vmem>>, vector<1x1x1x128xf32>,
    return
  }
  func.func @transform_0(%arg0: i32, %arg1: i32) -> (i32, i32, i32, i32) {
    %c0_i32 = arith.constant 0 : i32
    %c0_i32_0 = arith.constant 0 : i32
    %c0_i32_1 = arith.constant 0 : i32
    return %arg0, %c0_i32, %arg1, %c0_i32_0 : i32, i32, i32, i32
  }
  func.func @transform_1(%arg0: i32, %arg1: i32) -> (i32, i32, i32, i32) {
    %c0_i32 = arith.constant 0 : i32
    %c0_i32_0 = arith.constant 0 : i32
    %c0_i32_1 = arith.constant 0 : i32
    return %arg0, %c0_i32, %arg1, %c0_i32_0 : i32, i32, i32, i32
  }
  func.func @transform_2(%arg0: i32, %arg1: i32) -> (i32, i32, i32, i32) {
    %c0_i32 = arith.constant 0 : i32
    %c0_i32_0 = arith.constant 0 : i32
    %c0_i32_1 = arith.constant 0 : i32
    return %arg0, %arg1, %c0_i32, %c0_i32_0 : i32, i32, i32, i32
  }
}

</mosaic_0001>

<llo_original>
// kernel: tpu_custom_call.1
$region0: #{tpu_custom_call.1}
  #allocation0 [shape = 'u32[]', space=smem, size = 0x4, offset = 0x4, fixed_abs, tag = 'smem constant byte address 0x4 - core index']
  #allocation1 [shape = 'u32[72,128]{1,0:T(1,128)}', space=vmem, size = 0x9000, scoped, tag = 'internal scratch']
  %s0 = inlined_call_operand.hbm [shape: f32[2,4,2,128], index: 0, kind: input, shape index: {}]
  %s1 = inlined_call_operand.hbm [shape: s8[2,1,2,128], index: 1, kind: input, shape index: {}]
  %s2 = inlined_call_operand.hbm [shape: f32[2,1,1,128], index: 2, kind: output, shape index: {}]
  %s3 = sld [smem:[#allocation0]]
  $region49: #{tpu_custom_call.1} parent=0
    _
  %s5 = ssub.s32 1, %s3
  %s6 = scalar_select 0, %s5, %s3
  $region1: #{tpu_custom_call.1} parent=0
    #allocation2 [shape = 'u8[8192]{0}', space=vmem, size = 0x2000, scoped, tag = 'input window, operand 0']
    #allocation3 [shape = 's32[2]{0}', space=sflag, size = 0x8, scoped, tag = 'scoped memory for tpu_custom_call.1']
    #allocation4 [shape = 's32[2]{0}', space=sflag, size = 0x8, scoped, tag = 'scoped memory for tpu_custom_call.1']
    #allocation5 [shape = 'u8[1024]{0}', space=vmem, size = 0x400, scoped, tag = 'input window, operand 1']
    #allocation6 [shape = 's32[2]{0}', space=sflag, size = 0x8, scoped, tag = 'scoped memory for tpu_custom_call.1']
    #allocation7 [shape = 'u8[1024]{0}', space=vmem, size = 0x400, scoped, tag = 'output window, operand 0']
    %7 = vsyncpa [#allocation3], 0
    %s8 = scalar_lea.sflag [#allocation3], 1
    %9 = vsyncpa %s8, 0
    %10 = vsyncpa [#allocation6], 0
    %s11 = scalar_lea.sflag [#allocation6], 1
    %12 = vsyncpa %s11, 0
    %13 = vsyncpa [#allocation4], 0
    %s14 = scalar_lea.sflag [#allocation4], 1
    %15 = vsyncpa %s14, 0
    loop: start=0, step=1, limit=4
    $region2: #{tpu_custom_call.1} parent=1 // loop_pre_header
      _
    $region3: #{tpu_custom_call.1} parent=1 // loop_header
      %s17 = sphi 0, %s21
      %p18 = scmp.ge.s32.totalorder %s17, 4
      %s24 = sphi 0, %s36
      %s25 = sphi 0, %s32
      %s26 = sphi 0, %s24
      %s27 = sphi 0, %s25
      %s28 = sphi 0, %s26
      %s29 = sphi 0, %s27
      %s41 = sphi 0, %s43
      %s44 = sphi 0, %s41
      %s45 = sphi 0, %s44
      %s61 = sphi 0, %s45
      %s69 = sphi 0, %s71
      %s72 = sphi 0, %s69
      %s73 = sphi 0, %s72
      %s89 = sphi 0, %s73
      %s97 = sphi 0, %s99
      %s100 = sphi 0, %s97
      %s101 = sphi 0, %s100
      %s117 = sphi 0, %s101
    $region4: #{tpu_custom_call.1} parent=1 // loop_header_branch
      %20 = sbr.rel (%p18) target = $region8
    $region5: #{tpu_custom_call.1} parent=1 // loop_body
      %s22 = ssub.s32 %s17, 1
      %s23 = ssub.s32 %s17, 2
      %s30 = sadd.s32 1, %s25
      %p31 = scmp.ge.s32.totalorder %s30, 1
      %s32 = scalar_select %p31, 0, %s30
      %s33 = sadd.s32 1, %s24
      %s34 = scalar_select %p31, %s33, %s24
      %p35 = scmp.ge.s32.totalorder %s34, 2
      %s36 = scalar_select %p35, 0, %s34
      %s37 = ssub.s32 %s24, %s36
      %s38 = ssub.s32 %s25, %s32
      %s39 = sor.u32 %s37, %s38
      %p40 = scmp.eq.s32.totalorder %s39, 0
      %s42 = sadd.s32 %s41, 1
      %s43 = scalar_select %p40, %s41, %s42
      %p46 = pneg %p40
      %p47 = scmp.eq.s32.totalorder %s17, 1
      %p48 = por %p46, %p47
      %p49 = scmp.ne.s32.totalorder %s41, %s44
      %p50 = scmp.eq.s32.totalorder %s17, 0
      %p51 = por %p49, %p50
      %p52 = scmp.ne.s32.totalorder %s41, %s44
      %p53 = scmp.eq.s32.totalorder %s22, 1
      %p54 = por %p52, %p53
      %p55 = scmp.ne.s32.totalorder %s44, %s45
      %p56 = scmp.eq.s32.totalorder %s22, 0
      %p57 = por %p55, %p56
      %p58 = scmp.ne.s32.totalorder %s44, %s45
      %p59 = scmp.eq.s32.totalorder %s23, 1
      %p60 = por %p58, %p59
      %p62 = scmp.ne.s32.totalorder %s45, %s61
      %p63 = scmp.eq.s32.totalorder %s23, 0
      %p64 = por %p62, %p63
      %s65 = ssub.s32 %s24, %s36
      %s66 = ssub.s32 %s25, %s32
      %s67 = sor.u32 %s65, %s66
      %p68 = scmp.eq.s32.totalorder %s67, 0
      %s70 = sadd.s32 %s69, 1
      %s71 = scalar_select %p68, %s69, %s70
      %p74 = pneg %p68
      %p75 = scmp.eq.s32.totalorder %s17, 1
      %p76 = por %p74, %p75
      %p77 = scmp.ne.s32.totalorder %s69, %s72
      %p78 = scmp.eq.s32.totalorder %s17, 0
      %p79 = por %p77, %p78
      %p80 = scmp.ne.s32.totalorder %s69, %s72
      %p81 = scmp.eq.s32.totalorder %s22, 1
      %p82 = por %p80, %p81
      %p83 = scmp.ne.s32.totalorder %s72, %s73
      %p84 = scmp.eq.s32.totalorder %s22, 0
      %p85 = por %p83, %p84
      %p86 = scmp.ne.s32.totalorder %s72, %s73
      %p87 = scmp.eq.s32.totalorder %s23, 1
      %p88 = por %p86, %p87
      %p90 = scmp.ne.s32.totalorder %s73, %s89
      %p91 = scmp.eq.s32.totalorder %s23, 0
      %p92 = por %p90, %p91
      %s93 = ssub.s32 %s24, %s36
      %s94 = ssub.s32 %s25, %s32
      %s95 = sor.u32 %s93, %s94
      %p96 = scmp.eq.s32.totalorder %s95, 0
      %s98 = sadd.s32 %s97, 1
      %s99 = scalar_select %p96, %s97, %s98
      %p102 = pneg %p96
      %p103 = scmp.eq.s32.totalorder %s17, 1
      %p104 = por %p102, %p103
      %p105 = scmp.ne.s32.totalorder %s97, %s100
      %p106 = scmp.eq.s32.totalorder %s17, 0
      %p107 = por %p105, %p106
      %p108 = scmp.ne.s32.totalorder %s97, %s100
      %p109 = scmp.eq.s32.totalorder %s22, 1
      %p110 = por %p108, %p109
      %p111 = scmp.ne.s32.totalorder %s100, %s101
      %p112 = scmp.eq.s32.totalorder %s22, 0
      %p113 = por %p111, %p112
      %p114 = scmp.ne.s32.totalorder %s100, %s101
      %p115 = scmp.eq.s32.totalorder %s23, 1
      %p116 = por %p114, %p115
      %p118 = scmp.ne.s32.totalorder %s101, %s117
      %p119 = scmp.eq.s32.totalorder %s23, 0
      %p120 = por %p118, %p119
      %p121 = scmp.le.s32.totalorder 1, %s17
      %p122 = scmp.lt.s32.totalorder %s17, 3
      %p123 = pnand %p121, %p122
      %p124 = pneg %p123
      // Predicated region
      $region9: #{tpu_custom_call.1} parent=5 // pred_check
        _
      $region10: #{tpu_custom_call.1} parent=5 // pred_check_branch
        %126 = sbr.rel (%p123) target = $region12
      $region11: #{tpu_custom_call.1} parent=5 // pred_region
        %s127 = ssub.s32 %s17, 1
      $region12: #{tpu_custom_call.1} parent=5 // pred_fallthru
        _
      %p128 = scmp.lt.s32.totalorder %s17, 2
      // Predicated region
      $region13: #{tpu_custom_call.1} parent=5 // pred_check
        %p129 = pneg %p128
      $region14: #{tpu_custom_call.1} parent=5 // pred_check_branch
        %131 = sbr.rel (%p129) target = $region16
      $region15: #{tpu_custom_call.1} parent=5 // pred_region
        // Predicated region
        $region17: #{tpu_custom_call.1} parent=15 // pred_check
          %p132 = pneg %p51
        $region18: #{tpu_custom_call.1} parent=15 // pred_check_branch
          %134 = sbr.rel (%p132) target = $region20
        $region19: #{tpu_custom_call.1} parent=15 // pred_region
          %s135 = sand.u32 %s41, 1
          %s136 = scalar_lea.sflag [#allocation3], %s135
          %s137 = sand.u32 %s41, 1
          %s138 = smul.addr %s137, 8
          %s139 = scalar_lea.vmem [#allocation2], %s138
          %141 = vsyncadd %s136, 0
          %s142 = smul.addr %s24, 4
          %s143 = sadd.s32 %s25, %s142
          %s144 = smul.addr %s143, 2
          %s145 = scalar_lea.hbm %s0, %s144
          %s146 = sshll.u32 %s145, 4
          %s147 = int_to_ptr.hbm [resolvable:$true] %s146
          %s148 = sshll.u32 %s139, 4
          %s149 = int_to_ptr.vmem [resolvable:$true] %s148
          %154 = dma.hbm_to_vmem [thread:$0]  %s147, 128, %s149, %s136, 32, 32, 2
        $region20: #{tpu_custom_call.1} parent=15 // pred_fallthru
          _
        // Predicated region
        $region21: #{tpu_custom_call.1} parent=15 // pred_check
          %p155 = pneg %p79
        $region22: #{tpu_custom_call.1} parent=15 // pred_check_branch
          %157 = sbr.rel (%p155) target = $region24
        $region23: #{tpu_custom_call.1} parent=15 // pred_region
          %s158 = sand.u32 %s69, 1
          %s159 = scalar_lea.sflag [#allocation6], %s158
          %s160 = sand.u32 %s69, 1
          %s161 = scalar_lea.vmem [#allocation5], %s160
          %163 = vsyncadd %s159, 0
          %s164 = sadd.s32 %s25, %s24
          %s165 = scalar_lea.hbm %s1, %s164
          %s167 = sshll.u32 %s165, 4
          %s168 = int_to_ptr.hbm [resolvable:$true] %s167
          %s169 = sshll.u32 %s161, 4
          %s170 = int_to_ptr.vmem [resolvable:$true] %s169
          %172 = dma.hbm_to_vmem [thread:$0]  %s168, 16, %s170, %s159
        $region24: #{tpu_custom_call.1} parent=15 // pred_fallthru
          _
      $region16: #{tpu_custom_call.1} parent=5 // pred_fallthru
        _
      %p173 = scmp.le.s32.totalorder 1, %s17
      %p174 = scmp.lt.s32.totalorder %s17, 3
      %p175 = pnand %p173, %p174
      %p176 = pneg %p175
      // Predicated region
      $region25: #{tpu_custom_call.1} parent=5 // pred_check
        _
      $region26: #{tpu_custom_call.1} parent=5 // pred_check_branch
        %178 = sbr.rel (%p175) target = $region28
      $region27: #{tpu_custom_call.1} parent=5 // pred_region
        %s179 = ssub.s32 %s17, 1
        %s180 = sand.u32 %s44, 1
        %s181 = scalar_lea.sflag [#allocation3], %s180
        %s182 = sand.u32 %s44, 1
        %s183 = smul.addr %s182, 8
        %s184 = scalar_lea.vmem [#allocation2], %s183
        // Predicated region
        $region29: #{tpu_custom_call.1} parent=27 // pred_check
          %p185 = pneg %p57
        $region30: #{tpu_custom_call.1} parent=27 // pred_check_branch
          %187 = sbr.rel (%p185) target = $region32
        $region31: #{tpu_custom_call.1} parent=27 // pred_region
          %189 = dma.done %s181, 128
        $region32: #{tpu_custom_call.1} parent=27 // pred_fallthru
          _
        %s190 = sand.u32 %s72, 1
        %s191 = scalar_lea.sflag [#allocation6], %s190
        %s192 = sand.u32 %s72, 1
        %s193 = scalar_lea.vmem [#allocation5], %s192
        // Predicated region
        $region33: #{tpu_custom_call.1} parent=27 // pred_check
          %p194 = pneg %p85
        $region34: #{tpu_custom_call.1} parent=27 // pred_check_branch
          %196 = sbr.rel (%p194) target = $region36
        $region35: #{tpu_custom_call.1} parent=27 // pred_region
          %198 = dma.done %s191, 16
        $region36: #{tpu_custom_call.1} parent=27 // pred_fallthru
          _
        %s199 = sand.u32 %s44, 1
        %s200 = scalar_lea.sflag [#allocation3], %s199
        %s201 = sand.u32 %s44, 1
        %s202 = smul.addr %s201, 8
        %s203 = scalar_lea.vmem [#allocation2], %s202
        %p204 = pneg %p57
        %p205 = pneg %p54
        %s206 = sand.u32 %s72, 1
        %s207 = scalar_lea.sflag [#allocation6], %s206
        %s208 = sand.u32 %s72, 1
        %s209 = scalar_lea.vmem [#allocation5], %s208
        %p210 = pneg %p85
        %p211 = pneg %p82
        %p212 = pneg %p113
        %p213 = pneg %p110
        %s214 = sand.u32 %s100, 1
        %s215 = scalar_lea.sflag [#allocation4], %s214
        %s216 = sand.u32 %s100, 1
        %s217 = scalar_lea.vmem [#allocation7], %s216
        %v218 = vld [vmem:[%s193] sm:$0x1]
        %v219 = vunpack.c.0.s8 %v218
        %v220 = vld [vmem:[%s184] sm:$0x3]
        %s221 = scalar_lea.vmem %s184, 2 [#allocation2]
        %v222 = vld [vmem:[%s221] sm:$0x3]
        %v223 = vmax.f32 %v220, %v222
        %s224 = scalar_lea.vmem %s184, 4 [#allocation2]
        %v225 = vld [vmem:[%s224] sm:$0x3]
        %v226 = vmax.f32 %v223, %v225
        %s227 = scalar_lea.vmem %s184, 6 [#allocation2]
        %v228 = vld [vmem:[%s227] sm:$0x3]
        %v229 = vmax.f32 %v226, %v228
        %v230 = vsub.f32 %v220, %v229
        %v231 = vmul.f32 %v230, 1.442695
        %v232 = vpow.pop %v231
        %vm233 = vcmp.eq.s32.totalorder %v219, 0
        %v234 = vsel %vm233, %v220, 0.0
        %v235 = vsub.f32 %v222, %v229
        %v236 = vmul.f32 %v235, 1.442695
        %v237 = vpow.pop %v236
        %v238 = vadd.f32 %v232, %v237
        %vm239 = vcmp.eq.s32.totalorder %v219, 1
        %v240 = vsel %vm239, %v222, %v234
        %v241 = vsub.f32 %v225, %v229
        %v242 = vmul.f32 %v241, 1.442695
        %v243 = vpow.pop %v242
        %v244 = vadd.f32 %v238, %v243
        %vm245 = vcmp.eq.s32.totalorder %v219, 2
        %v246 = vsel %vm245, %v225, %v240
        %v247 = vsub.f32 %v228, %v229
        %v248 = vmul.f32 %v247, 1.442695
        %v249 = vpow.pop %v248
        %v250 = vadd.f32 %v244, %v249
        %vm251 = vcmp.eq.s32.totalorder %v219, 3
        %v252 = vsel %vm251, %v228, %v246
        %v253 = vsub.f32 %v252, %v229
        %v254 = vlog2.pop %v250
        %v255 = vmul.f32 %v254, 0.6931472
        %v256 = vsub.f32 %v253, %v255
        %v257 = vmul.f32 %v256, 1.442695
        %v258 = vpow.pop %v257
        %v259 = vsel %vm233, 0.1, 0.0
        %v260 = vsel %vm239, 0.2, %v259
        %v261 = vsel %vm245, 0.3, %v260
        %v262 = vsel %vm251, 0.4, %v261
        %v263 = vmul.f32 %v256, %v262
        %v264 = vsub.f32 1.0, %v258
        %v265 = vmul.f32 %v264, %v264
        %v266 = vmul.f32 %v265, -1.0
        %v267 = vmul.f32 %v266, %v263
        %vm268 = vcmask 1041408
        %v269 = vsel %vm268, %v267, 0.0
        %v270 = vrot.slane %v269, 4
        %v271 = vadd.f32 %v269, %v270
        %v272 = vrot.slane %v271, 2
        %v273 = vadd.f32 %v271, %v272
        %v274 = vrot.slane %v273, 1
        %v275 = vadd.f32 %v273, %v274
        %276 = vst [vmem:[%s217] sm:$0x1] %v275
        %s277 = sand.u32 %s100, 1
        %s278 = scalar_lea.sflag [#allocation4], %s277
        %s279 = sand.u32 %s100, 1
        %s280 = scalar_lea.vmem [#allocation7], %s279
        // Predicated region
        $region37: #{tpu_custom_call.1} parent=27 // pred_check
          %p281 = pneg %p110
        $region38: #{tpu_custom_call.1} parent=27 // pred_check_branch
          %283 = sbr.rel (%p281) target = $region40
        $region39: #{tpu_custom_call.1} parent=27 // pred_region
          %285 = vsyncadd %s278, 0
          %s286 = sadd.s32 %s27, %s26
          %s287 = scalar_lea.hbm %s2, %s286
          %s289 = sshll.u32 %s280, 4
          %s290 = int_to_ptr.vmem [resolvable:$true] %s289
          %s291 = sshll.u32 %s287, 4
          %s292 = int_to_ptr.hbm [resolvable:$true] %s291
          %294 = dma.vmem_to_hbm [thread:$0]  %s290, 16, %s292, %s278
        $region40: #{tpu_custom_call.1} parent=27 // pred_fallthru
          _
      $region28: #{tpu_custom_call.1} parent=5 // pred_fallthru
        _
      %p295 = scmp.le.s32.totalorder 2, %s17
      // Predicated region
      $region41: #{tpu_custom_call.1} parent=5 // pred_check
        %p296 = pneg %p295
      $region42: #{tpu_custom_call.1} parent=5 // pred_check_branch
        %298 = sbr.rel (%p296) target = $region44
      $region43: #{tpu_custom_call.1} parent=5 // pred_region
        %s299 = ssub.s32 %s17, 2
        // Predicated region
        $region45: #{tpu_custom_call.1} parent=43 // pred_check
          %p300 = pneg %p116
        $region46: #{tpu_custom_call.1} parent=43 // pred_check_branch
          %302 = sbr.rel (%p300) target = $region48
        $region47: #{tpu_custom_call.1} parent=43 // pred_region
          %s303 = sand.u32 %s101, 1
          %s304 = scalar_lea.sflag [#allocation4], %s303
          %s305 = sand.u32 %s101, 1
          %s306 = scalar_lea.vmem [#allocation7], %s305
          %308 = dma.done %s304, 16
        $region48: #{tpu_custom_call.1} parent=43 // pred_fallthru
          _
      $region44: #{tpu_custom_call.1} parent=5 // pred_fallthru
        _
    $region6: #{tpu_custom_call.1} parent=1 // loop_footer
      %s21 = sadd.s32 1, %s17
    $region7: #{tpu_custom_call.1} parent=1 // loop_footer_branch
      %16 = sbr.rel target = $region3
    $region8: #{tpu_custom_call.1} parent=1 // loop_exit
      _
    %309 = vsyncpa [#allocation3], 1
    %s310 = scalar_lea.sflag [#allocation3], 1
    %311 = vsyncpa %s310, 1
    %312 = vsyncpa [#allocation6], 1
    %s313 = scalar_lea.sflag [#allocation6], 1
    %314 = vsyncpa %s313, 1
    %315 = vsyncpa [#allocation4], 1
    %s316 = scalar_lea.sflag [#allocation4], 1
    %317 = vsyncpa %s316, 1

</llo_original>
